<compile_context>
chip_gen: v5e
topology: v5e:2x2
jax: 0.10.0
libtpu: 0.0.40
codegen_flags: <defaults>
</compile_context>

<pallas_src>
import jax
import jax.numpy as jnp
from jax import lax
from jax.experimental import pallas as pl
from jax.experimental.pallas import tpu as pltpu


def _round_up(x, m):
    return (x + m - 1) // m * m


def _fused_kernel(ids_ref,            # VMEM (TM, 1)  int32  token ids for this row tile
                  emb_ref,            # VMEM (V, D)   bf16   resident embedding table
                  w1_ref, b1_ref,     # VMEM (D, D)   bf16,  (1, D) f32   (resident)
                  w2_ref, b2_ref,     # VMEM (D, TV)  bf16,  (1, TV) f32  (vocab tile)
                  out_ref,            # VMEM (TM, TV) f32
                  h_ref):             # VMEM scratch (TM, D) bf16 -- ReLU(x @ W1 + b1)
    # Grid = (row tiles [parallel], vocab tiles [arbitrary / sequential]).
    @pl.when(pl.program_id(1) == 0)
    def _():
        tm = ids_ref.shape[0]
        v = emb_ref.shape[0]
        # ---- fused embedding gather as a one-hot MXU matmul -----------------
        # one-hot(bf16) @ emb(bf16) with f32 accumulate is an exact row select
        # of the bf16 table (1.0 * value + zeros).
        eq = ids_ref[...] == lax.broadcasted_iota(jnp.int32, (tm, v), 1)
        onehot = jnp.where(eq, 1.0, 0.0).astype(jnp.bfloat16)
        x = jnp.dot(onehot, emb_ref[...], preferred_element_type=jnp.float32)
        # ---- layer 1: (TM, D) @ (D, D), bias + ReLU in f32 on the VPU --------
        h = jnp.dot(x.astype(jnp.bfloat16), w1_ref[...],
                    preferred_element_type=jnp.float32)
        h = jnp.maximum(h + b1_ref[...], 0.0)
        h_ref[...] = h.astype(h_ref.dtype)          # bf16 for the second matmul

    # ---- layer 2 for this vocab tile: (TM, D) @ (D, TV) + bias ---------------
    logits = jnp.dot(h_ref[...], w2_ref[...], preferred_element_type=jnp.float32)
    out_ref[...] = (logits + b2_ref[...]).astype(out_ref.dtype)


@jax.jit
def simple_model_forward(idx, emb, w1, b1, w2, b2):
    """idx: (B, T) int32 token ids -> logits (B, T, V) float32."""
    B, T = idx.shape
    V, D = emb.shape
    N = B * T

    # Row tile: multiple of 8 sublanes, capped at 256 (v6e/v7x MXU M dim; also
    # fine on v5e).  N is padded up to the tile.
    tm = min(256, _round_up(N, 8))
    n_pad = _round_up(N, tm)

    # Vocab tile: 512 columns when V is at least that big, else V rounded up to a
    # lane multiple.  V is always padded up to a tile multiple (no tv = V fallback).
    tv = 512 if V >= 512 else _round_up(V, 128)
    v_pad = _round_up(V, tv)

    # TODO(synk): very large vocabularies (bf16 table >> VMEM) need an
    # HBM-resident table with prefetched row gathers instead of the resident
    # one-hot gather used here.

    ids = idx.reshape(-1, 1).astype(jnp.int32)
    if n_pad > N:
        ids = jnp.pad(ids, ((0, n_pad - N), (0, 0)))   # padded rows sliced off below

    # bf16 operands for the MXU; biases stay f32 for the epilogue.
    emb_bf = emb.astype(jnp.bfloat16)
    w1_bf = w1.astype(jnp.bfloat16)
    b1_f = b1.reshape(1, D).astype(jnp.float32)
    w2_bf = w2.astype(jnp.bfloat16)
    b2_f = b2.reshape(1, V).astype(jnp.float32)
    if v_pad > V:
        w2_bf = jnp.pad(w2_bf, ((0, 0), (0, v_pad - V)))
        b2_f = jnp.pad(b2_f, ((0, 0), (0, v_pad - V)))

    grid = (n_pad // tm, v_pad // tv)
    n_row_tiles = grid[0]

    # Explicit VMEM budget from the actual (double-buffered) block sizes + headroom.
    vmem_bytes = (2 * (tm * 4)                        # ids blocks
                  + 2 * (V * D * 2)                   # resident emb (bf16)
                  + 2 * (D * D * 2 + D * 4)           # W1 + b1
                  + 2 * (D * tv * 2 + tv * 4)         # W2/b2 vocab tiles
                  + 2 * (tm * tv * 4)                 # out tiles
                  + tm * D * 2)                       # h scratch
    vmem_limit = int(min(100 * 2**20, max(8 * 2**20, 2 * vmem_bytes)))

    cost = pl.CostEstimate(
        flops=(2 * n_pad * V * D            # one-hot gather matmul
               + 2 * n_pad * D * D          # layer 1
               + 2 * n_pad * D * v_pad),    # layer 2
        transcendentals=0,
        bytes_accessed=(4 * n_pad                          # token ids
                        + 2 * V * D                        # emb (bf16, fetched once)
                        + 2 * D * D + 4 * D                # W1 + b1
                        + n_row_tiles * (2 * D * v_pad + 4 * v_pad)   # W2/b2 re-streamed
                        + 4 * n_pad * v_pad))              # logits out

    out = pl.pallas_call(
        _fused_kernel,
        out_shape=jax.ShapeDtypeStruct((n_pad, v_pad), jnp.float32),
        grid_spec=pltpu.PrefetchScalarGridSpec(
            num_scalar_prefetch=0,
            grid=grid,
            in_specs=[
                pl.BlockSpec((tm, 1), lambda i, j: (i, 0)),    # token ids per row tile
                pl.BlockSpec((V, D), lambda i, j: (0, 0)),     # emb (resident)
                pl.BlockSpec((D, D), lambda i, j: (0, 0)),     # W1 (resident)
                pl.BlockSpec((1, D), lambda i, j: (0, 0)),     # b1 (resident)
                pl.BlockSpec((D, tv), lambda i, j: (0, j)),    # W2 vocab tile
                pl.BlockSpec((1, tv), lambda i, j: (0, j)),    # b2 vocab tile
            ],
            out_specs=pl.BlockSpec((tm, tv), lambda i, j: (i, j)),
            scratch_shapes=[
                pltpu.VMEM((tm, D), jnp.bfloat16),             # hidden activations
            ]),
        compiler_params=pltpu.CompilerParams(
            dimension_semantics=("parallel", "arbitrary"),
            vmem_limit_bytes=vmem_limit),
        cost_estimate=cost,
    )(ids, emb_bf, w1_bf, b1_f, w2_bf, b2_f)

    return out[:N, :V].reshape(B, T, V)


def init_params(key, vocab_size, d_model):
    """Deterministic synthetic parameters (shapes from SimpleModel.__init__)."""
    k_emb, k_w1, k_b1, k_w2, k_b2 = jax.random.split(key, 5)
    emb = jax.random.normal(k_emb, (vocab_size, d_model), jnp.float32)
    # nn.Linear weights stored transposed so the kernel computes x @ W.
    w1 = jax.random.normal(k_w1, (d_model, d_model), jnp.float32) * (d_model ** -0.5)
    b1 = jax.random.normal(k_b1, (1, d_model), jnp.float32) * 0.01
    w2 = jax.random.normal(k_w2, (d_model, vocab_size), jnp.float32) * (d_model ** -0.5)
    b2 = jax.random.normal(k_b2, (1, vocab_size), jnp.float32) * 0.01
    return emb, w1, b1, w2, b2


if __name__ == "__main__":
    # Small config consistent with the module's forward.
    config = {"batch_size": 2, "context_window": 16, "d_model": 128, "vocab_size": 256}
    # TODO(synk): targets / F.cross_entropy branch not implemented (forward is
    # exercised in logits-only mode, matching `targets=None`).

    key = jax.random.PRNGKey(0)
    k_params, k_idx = jax.random.split(key)
    emb, w1, b1, w2, b2 = init_params(
        k_params, config["vocab_size"], config["d_model"])

    idx = jax.random.randint(
        k_idx, (config["batch_size"], config["context_window"]),
        minval=0, maxval=config["vocab_size"], dtype=jnp.int32)

    logits = simple_model_forward(idx, emb, w1, b1, w2, b2)
    jax.block_until_ready(logits)

    # Reference with the same bf16 rounding of matmul operands (f32 accumulate).
    f32 = jnp.float32
    hi = lax.Precision.HIGHEST
    x_r = jnp.take(emb.astype(jnp.bfloat16).astype(f32), idx, axis=0)
    x_r = x_r.astype(jnp.bfloat16).astype(f32)
    w1_r = w1.astype(jnp.bfloat16).astype(f32)
    w2_r = w2.astype(jnp.bfloat16).astype(f32)
    h_r = jnp.maximum(jnp.matmul(x_r, w1_r, precision=hi) + b1[0], 0.0)
    h_r = h_r.astype(jnp.bfloat16).astype(f32)
    logits_ref = jnp.matmul(h_r, w2_r, precision=hi) + b2[0]

    assert logits.shape == (config["batch_size"], config["context_window"],
                            config["vocab_size"])
    max_err = float(jnp.max(jnp.abs(logits - logits_ref)))
    assert jnp.allclose(logits, logits_ref, atol=2e-3, rtol=2e-3), max_err

    print("KERNEL_OK")
</pallas_src>

<mosaic_0001>
module attributes {stable_mosaic.version = 11 : i64} {
  func.func @_fused_kernel(%arg0: i32, %arg1: i32, %arg2: memref<32x1xi32, #tpu.memory_space<vmem>>, %arg3: memref<256x128xbf16, #tpu.memory_space<vmem>>, %arg4: memref<128x128xbf16, #tpu.memory_space<vmem>>, %arg5: memref<1x128xf32, #tpu.memory_space<vmem>>, %arg6: memref<128x256xbf16, #tpu.memory_space<vmem>>, %arg7: memref<1x256xf32, #tpu.memory_space<vmem>>, %arg8: memref<32x256xf32, #tpu.memory_space<vmem>>, %arg9: memref<32x128xbf16, #tpu.memory_space<vmem>>) attributes {dimension_semantics = [#tpu.dimension_semantics<parallel>, #tpu.dimension_semantics<arbitrary>], iteration_bounds = array<i64: 1, 1>, scalar_prefetch = 0 : i64, scratch_operands = 1 : i64, tpu.core_type = #tpu.core_type<tc>, window_params = [{transform_indices = @transform_0, window_bounds = array<i64: 32, 1>}, {pipeline_mode = #tpu.pipeline_mode<synchronous>, transform_indices = @transform_1, window_bounds = array<i64: 256, 128>}, {pipeline_mode = #tpu.pipeline_mode<synchronous>, transform_indices = @transform_2, window_bounds = array<i64: 128, 128>}, {pipeline_mode = #tpu.pipeline_mode<synchronous>, transform_indices = @transform_3, window_bounds = array<i64: 1, 128>}, {transform_indices = @transform_4, window_bounds = array<i64: 128, 256>}, {transform_indices = @transform_5, window_bounds = array<i64: 1, 256>}, {transform_indices = @transform_6, window_bounds = array<i64: 32, 256>}]} {
    %c0_i32 = arith.constant 0 : i32
    %0 = arith.cmpi eq, %arg1, %c0_i32 : i32
    %1 = arith.extui %0 : i1 to i32
    %c0_i32_0 = arith.constant 0 : i32
    %2 = arith.cmpi ne, %1, %c0_i32_0 : i32
    scf.if %2 {
      %c0_8 = arith.constant 0 : index
      %c0_9 = arith.constant 0 : index
      %10 = vector.load %arg2[%c0_8, %c0_9] : memref<32x1xi32, #tpu.memory_space<vmem>>, vector<32x1xi32>
      %11 = tpu.iota {dimensions = array<i32: 1>} : vector<32x256xi32>
      %12 = vector.broadcast %10 : vector<32x1xi32> to vector<32x256xi32>
      %13 = arith.cmpi eq, %12, %11 : vector<32x256xi32>
      %cst_10 = arith.constant 1.000000e+00 : f32
      %cst_11 = arith.constant 0.000000e+00 : f32
      %14 = vector.broadcast %cst_10 : f32 to vector<32x256xf32>
      %15 = vector.broadcast %cst_11 : f32 to vector<32x256xf32>
      %16 = arith.select %13, %14, %15 : vector<32x256xi1>, vector<32x256xf32>
      %17 = arith.truncf %16 : vector<32x256xf32> to vector<32x256xbf16>
      %c0_12 = arith.constant 0 : index
      %c0_13 = arith.constant 0 : index
      %18 = vector.load %arg3[%c0_12, %c0_13] : memref<256x128xbf16, #tpu.memory_space<vmem>>, vector<256x128xbf16>
      %cst_14 = arith.constant dense<0.000000e+00> : vector<32x128xf32>
      %19 = tpu.matmul %17, %18, %cst_14 {dimension_numbers = #tpu.dot_dimension_numbers<[1], [0], [0], [1], [0, 0, 1, 1], [], []>} : vector<32x256xbf16>, vector<256x128xbf16>, vector<32x128xf32> -> vector<32x128xf32>
      %20 = arith.truncf %19 : vector<32x128xf32> to vector<32x128xbf16>
      %c0_15 = arith.constant 0 : index
      %c0_16 = arith.constant 0 : index
      %21 = vector.load %arg4[%c0_15, %c0_16] : memref<128x128xbf16, #tpu.memory_space<vmem>>, vector<128x128xbf16>
      %cst_17 = arith.constant dense<0.000000e+00> : vector<32x128xf32>
      %22 = tpu.matmul %20, %21, %cst_17 {dimension_numbers = #tpu.dot_dimension_numbers<[1], [0], [0], [1], [0, 0, 1, 1], [], []>} : vector<32x128xbf16>, vector<128x128xbf16>, vector<32x128xf32> -> vector<32x128xf32>
      %c0_18 = arith.constant 0 : index
      %c0_19 = arith.constant 0 : index
      %23 = vector.load %arg5[%c0_18, %c0_19] : memref<1x128xf32, #tpu.memory_space<vmem>>, vector<1x128xf32>
      %24 = vector.broadcast %23 : vector<1x128xf32> to vector<32x128xf32>
      %25 = arith.addf %22, %24 : vector<32x128xf32>
      %cst_20 = arith.constant 0.000000e+00 : f32
      %26 = vector.broadcast %cst_20 : f32 to vector<32x128xf32>
      %27 = arith.maximumf %25, %26 : vector<32x128xf32>
      %28 = arith.truncf %27 : vector<32x128xf32> to vector<32x128xbf16>
      %c0_21 = arith.constant 0 : index
      %c0_22 = arith.constant 0 : index
      %29 = vector.load %arg9[%c0_21, %c0_22] : memref<32x128xbf16, #tpu.memory_space<vmem>>, vector<32x128xbf16>
      tpu.vector_store %arg9[%c0_21, %c0_22], %28 {strides = array<i32>} : memref<32x128xbf16, #tpu.memory_space<vmem>>, vector<32x128xbf16>,
    } else {
    }
    %c0 = arith.constant 0 : index
    %c0_1 = arith.constant 0 : index
    %3 = vector.load %arg9[%c0, %c0_1] : memref<32x128xbf16, #tpu.memory_space<vmem>>, vector<32x128xbf16>
    %c0_2 = arith.constant 0 : index
    %c0_3 = arith.constant 0 : index
    %4 = vector.load %arg6[%c0_2, %c0_3] : memref<128x256xbf16, #tpu.memory_space<vmem>>, vector<128x256xbf16>
    %cst = arith.constant dense<0.000000e+00> : vector<32x256xf32>
    %5 = tpu.matmul %3, %4, %cst {dimension_numbers = #tpu.dot_dimension_numbers<[1], [0], [0], [1], [0, 0, 1, 1], [], []>} : vector<32x128xbf16>, vector<128x256xbf16>, vector<32x256xf32> -> vector<32x256xf32>
    %c0_4 = arith.constant 0 : index
    %c0_5 = arith.constant 0 : index
    %6 = vector.load %arg7[%c0_4, %c0_5] : memref<1x256xf32, #tpu.memory_space<vmem>>, vector<1x256xf32>
    %7 = vector.broadcast %6 : vector<1x256xf32> to vector<32x256xf32>
    %8 = arith.addf %5, %7 : vector<32x256xf32>
    %c0_6 = arith.constant 0 : index
    %c0_7 = arith.constant 0 : index
    %9 = vector.load %arg8[%c0_6, %c0_7] : memref<32x256xf32, #tpu.memory_space<vmem>>, vector<32x256xf32>
    tpu.vector_store %arg8[%c0_6, %c0_7], %8 {strides = array<i32>} : memref<32x256xf32, #tpu.memory_space<vmem>>, vector<32x256xf32>,
    return
  }
  func.func @transform_0(%arg0: i32, %arg1: i32) -> (i32, i32) {
    %c0_i32 = arith.constant 0 : i32
    %c0_i32_0 = arith.constant 0 : i32
    return %arg0, %c0_i32 : i32, i32
  }
  func.func @transform_1(%arg0: i32, %arg1: i32) -> (i32, i32) {
    %c0_i32 = arith.constant 0 : i32
    %c0_i32_0 = arith.constant 0 : i32
    %c0_i32_1 = arith.constant 0 : i32
    return %c0_i32, %c0_i32_0 : i32, i32
  }
  func.func @transform_2(%arg0: i32, %arg1: i32) -> (i32, i32) {
    %c0_i32 = arith.constant 0 : i32
    %c0_i32_0 = arith.constant 0 : i32
    %c0_i32_1 = arith.constant 0 : i32
    return %c0_i32, %c0_i32_0 : i32, i32
  }
  func.func @transform_3(%arg0: i32, %arg1: i32) -> (i32, i32) {
    %c0_i32 = arith.constant 0 : i32
    %c0_i32_0 = arith.constant 0 : i32
    %c0_i32_1 = arith.constant 0 : i32
    return %c0_i32, %c0_i32_0 : i32, i32
  }
  func.func @transform_4(%arg0: i32, %arg1: i32) -> (i32, i32) {
    %c0_i32 = arith.constant 0 : i32
    %c0_i32_0 = arith.constant 0 : i32
    return %c0_i32, %arg1 : i32, i32
  }
  func.func @transform_5(%arg0: i32, %arg1: i32) -> (i32, i32) {
    %c0_i32 = arith.constant 0 : i32
    %c0_i32_0 = arith.constant 0 : i32
    return %c0_i32, %arg1 : i32, i32
  }
  func.func @transform_6(%arg0: i32, %arg1: i32) -> (i32, i32) {
    %c0_i32 = arith.constant 0 : i32
    return %arg0, %arg1 : i32, i32
  }
}

</mosaic_0001>

<llo_original>
// kernel: simple_model_forward.1
$region0: #{simple_model_forward.1}
  #allocation0 [shape = 'u32[]', space=smem, size = 0x4, offset = 0x4, fixed_abs, tag = 'smem constant byte address 0x4 - core index']
  #allocation1 [shape = 'u32[72,128]{1,0:T(1,128)}', space=vmem, size = 0x9000, scoped, tag = 'internal scratch']
  #allocation2 [shape = 'bf16[32,128]{1,0:T(8,128)(2,1)}', space=vmem, size = 0x2000, scoped, tag = 'scratch operand']
  %s0 = inlined_call_operand.vmem [shape: s32[32,1], index: 0, kind: input, shape index: {}]
  %s1 = inlined_call_operand.vmem [shape: bf16[256,128], index: 1, kind: input, shape index: {}]
  %s2 = inlined_call_operand.vmem [shape: bf16[128,128], index: 2, kind: input, shape index: {}]
  %s3 = inlined_call_operand.vmem [shape: f32[1,128], index: 3, kind: input, shape index: {}]
  %s4 = inlined_call_operand.vmem [shape: bf16[128,256], index: 4, kind: input, shape index: {}]
  %s5 = inlined_call_operand.vmem [shape: f32[1,256], index: 5, kind: input, shape index: {}]
  %s6 = inlined_call_operand.hbm [shape: f32[32,256], index: 6, kind: output, shape index: {}]
  %s7 = sld [smem:[#allocation0]]
  $region38: #{simple_model_forward.1} parent=0
    _
  %s9 = ssub.s32 1, %s7
  %s10 = scalar_select 0, %s9, %s7
  $region1: #{simple_model_forward.1} parent=0
    #allocation3 [shape = 'u8[32768]{0}', space=vmem, size = 0x8000, scoped, tag = 'output window, operand 0, single buffered']
    #allocation4 [shape = 's32[1]{0}', space=sflag, size = 0x4, scoped, tag = 'scoped memory for simple_model_forward.1']
    %11 = vsyncpa [#allocation4], 0
    // Predicated region
    $region2: #{simple_model_forward.1} parent=1 // pred_check
      _
    $region3: #{simple_model_forward.1} parent=1 // pred_check_branch
      %13 = sbr.rel (0) target = $region5
    $region4: #{simple_model_forward.1} parent=1 // pred_region
      _
    $region5: #{simple_model_forward.1} parent=1 // pred_fallthru
      _
    // Predicated region
    $region6: #{simple_model_forward.1} parent=1 // pred_check
      _
    $region7: #{simple_model_forward.1} parent=1 // pred_check_branch
      %15 = sbr.rel (0) target = $region9
    $region8: #{simple_model_forward.1} parent=1 // pred_region
      _
    $region9: #{simple_model_forward.1} parent=1 // pred_fallthru
      _
    // Predicated region
    $region10: #{simple_model_forward.1} parent=1 // pred_check
      _
    $region11: #{simple_model_forward.1} parent=1 // pred_check_branch
      %17 = sbr.rel (0) target = $region13
    $region12: #{simple_model_forward.1} parent=1 // pred_region
      _
    $region13: #{simple_model_forward.1} parent=1 // pred_fallthru
      _
    // Predicated region
    $region14: #{simple_model_forward.1} parent=1 // pred_check
      _
    $region15: #{simple_model_forward.1} parent=1 // pred_check_branch
      %19 = sbr.rel (0) target = $region17
    $region16: #{simple_model_forward.1} parent=1 // pred_region
      _
    $region17: #{simple_model_forward.1} parent=1 // pred_fallthru
      _
    // Predicated region
    $region18: #{simple_model_forward.1} parent=1 // pred_check
      _
    $region19: #{simple_model_forward.1} parent=1 // pred_check_branch
      %21 = sbr.rel (0) target = $region21
    $region20: #{simple_model_forward.1} parent=1 // pred_region
      _
    $region21: #{simple_model_forward.1} parent=1 // pred_fallthru
      _
    // Predicated region
    $region22: #{simple_model_forward.1} parent=1 // pred_check
      _
    $region23: #{simple_model_forward.1} parent=1 // pred_check_branch
      %23 = sbr.rel (0) target = $region25
    $region24: #{simple_model_forward.1} parent=1 // pred_region
      _
    $region25: #{simple_model_forward.1} parent=1 // pred_fallthru
      _
    %p24 = scmp.eq.s32.totalorder 0, 0
    // Predicated region
    $region26: #{simple_model_forward.1} parent=1 // pred_check
      %p25 = pneg %p24
    $region27: #{simple_model_forward.1} parent=1 // pred_check_branch
      %27 = sbr.rel (%p25) target = $region29
    $region28: #{simple_model_forward.1} parent=1 // pred_region
      %v28 = vld [vmem:[%s0] sm:$0xff]
      %v29 = vld [vmem:[%s0 + $0x8] sm:$0xff]
      %v30 = vld [vmem:[%s0 + $0x10] sm:$0xff]
      %v31 = vld [vmem:[%s0 + $0x18] sm:$0xff]
      %v32 = vlaneseq
      %v33 = vand.u32 %v32, 127
      %v34 = vadd.s32 %v33, 128
      %35 = vset.pattern.permute.xlu0 0
      %36 = vperm.xlu0 %35, %v28
      %v37 = vpop.permute.xlu0 %36
      %38 = vset.pattern.permute.xlu0 0
      %39 = vperm.xlu0 %38, %v29
      %v40 = vpop.permute.xlu0 %39
      %41 = vset.pattern.permute.xlu0 0
      %42 = vperm.xlu0 %41, %v30
      %v43 = vpop.permute.xlu0 %42
      %44 = vset.pattern.permute.xlu0 0
      %45 = vperm.xlu0 %44, %v31
      %v46 = vpop.permute.xlu0 %45
      %vm47 = vcmp.eq.s32.totalorder %v37, %v33
      %vm48 = vcmp.eq.s32.totalorder %v37, %v34
      %vm49 = vcmp.eq.s32.totalorder %v40, %v33
      %vm50 = vcmp.eq.s32.totalorder %v40, %v34
      %vm51 = vcmp.eq.s32.totalorder %v43, %v33
      %vm52 = vcmp.eq.s32.totalorder %v43, %v34
      %vm53 = vcmp.eq.s32.totalorder %v46, %v33
      %vm54 = vcmp.eq.s32.totalorder %v46, %v34
      %v55 = vsel %vm47, 1.0, 0.0
      %v56 = vsel %vm48, 1.0, 0.0
      %v57 = vsel %vm49, 1.0, 0.0
      %v58 = vsel %vm50, 1.0, 0.0
      %v59 = vsel %vm51, 1.0, 0.0
      %v60 = vsel %vm52, 1.0, 0.0
      %v61 = vsel %vm53, 1.0, 0.0
      %v62 = vsel %vm54, 1.0, 0.0
      %v63 = vpack.c.bf16 %v57, %v55
      %v64 = vpack.c.bf16 %v58, %v56
      %v65 = vpack.c.bf16 %v61, %v59
      %v66 = vpack.c.bf16 %v62, %v60
      %v67 = vld [vmem:[%s1] sm:$0xf]
      %v68 = vld [vmem:[%s1 + $0x4] sm:$0xf]
      %v69 = vld [vmem:[%s1 + $0x8] sm:$0xf]
      %v70 = vld [vmem:[%s1 + $0xc] sm:$0xf]
      %v71 = vld [vmem:[%s1 + $0x10] sm:$0xf]
      %v72 = vld [vmem:[%s1 + $0x14] sm:$0xf]
      %v73 = vld [vmem:[%s1 + $0x18] sm:$0xf]
      %v74 = vld [vmem:[%s1 + $0x1c] sm:$0xf]
      %v75 = vld [vmem:[%s1 + $0x20] sm:$0xf]
      %v76 = vld [vmem:[%s1 + $0x24] sm:$0xf]
      %v77 = vld [vmem:[%s1 + $0x28] sm:$0xf]
      %v78 = vld [vmem:[%s1 + $0x2c] sm:$0xf]
      %v79 = vld [vmem:[%s1 + $0x30] sm:$0xf]
      %v80 = vld [vmem:[%s1 + $0x34] sm:$0xf]
      %v81 = vld [vmem:[%s1 + $0x38] sm:$0xf]
      %v82 = vld [vmem:[%s1 + $0x3c] sm:$0xf]
      %v83 = vld [vmem:[%s1 + $0x40] sm:$0xf]
      %v84 = vld [vmem:[%s1 + $0x44] sm:$0xf]
      %v85 = vld [vmem:[%s1 + $0x48] sm:$0xf]
      %v86 = vld [vmem:[%s1 + $0x4c] sm:$0xf]
      %v87 = vld [vmem:[%s1 + $0x50] sm:$0xf]
      %v88 = vld [vmem:[%s1 + $0x54] sm:$0xf]
      %v89 = vld [vmem:[%s1 + $0x58] sm:$0xf]
      %v90 = vld [vmem:[%s1 + $0x5c] sm:$0xf]
      %v91 = vld [vmem:[%s1 + $0x60] sm:$0xf]
      %v92 = vld [vmem:[%s1 + $0x64] sm:$0xf]
      %v93 = vld [vmem:[%s1 + $0x68] sm:$0xf]
      %v94 = vld [vmem:[%s1 + $0x6c] sm:$0xf]
      %v95 = vld [vmem:[%s1 + $0x70] sm:$0xf]
      %v96 = vld [vmem:[%s1 + $0x74] sm:$0xf]
      %v97 = vld [vmem:[%s1 + $0x78] sm:$0xf]
      %v98 = vld [vmem:[%s1 + $0x7c] sm:$0xf]
      %v131 = vunpack.c.l.b16 %v67
      %v132 = vunpack.c.l.b16 %v68
      %v133 = vunpack.c.l.b16 %v69
      %v134 = vunpack.c.l.b16 %v70
      %v135 = vunpack.c.l.b16 %v71
      %v136 = vunpack.c.l.b16 %v72
      %v137 = vunpack.c.l.b16 %v73
      %v138 = vunpack.c.l.b16 %v74
      %v139 = vunpack.c.l.b16 %v75
      %v140 = vunpack.c.l.b16 %v76
      %v141 = vunpack.c.l.b16 %v77
      %v142 = vunpack.c.l.b16 %v78
      %v143 = vunpack.c.l.b16 %v79
      %v144 = vunpack.c.l.b16 %v80
      %v145 = vunpack.c.l.b16 %v81
      %v146 = vunpack.c.l.b16 %v82
      %v147 = vunpack.c.l.b16 %v83
      %v148 = vunpack.c.l.b16 %v84
      %v149 = vunpack.c.l.b16 %v85
      %v150 = vunpack.c.l.b16 %v86
      %v151 = vunpack.c.l.b16 %v87
      %v152 = vunpack.c.l.b16 %v88
      %v153 = vunpack.c.l.b16 %v89
      %v154 = vunpack.c.l.b16 %v90
      %v155 = vunpack.c.l.b16 %v91
      %v156 = vunpack.c.l.b16 %v92
      %v157 = vunpack.c.l.b16 %v93
      %v158 = vunpack.c.l.b16 %v94
      %v159 = vunpack.c.l.b16 %v95
      %v160 = vunpack.c.l.b16 %v96
      %v161 = vunpack.c.l.b16 %v97
      %v162 = vunpack.c.l.b16 %v98
      %v163 = vpack.c.b16 %v132, %v131
      %v164 = vpack.c.b16 %v134, %v133
      %v165 = vpack.c.b16 %v136, %v135
      %v166 = vpack.c.b16 %v138, %v137
      %v167 = vpack.c.b16 %v140, %v139
      %v168 = vpack.c.b16 %v142, %v141
      %v169 = vpack.c.b16 %v144, %v143
      %v170 = vpack.c.b16 %v146, %v145
      %v171 = vpack.c.b16 %v148, %v147
      %v172 = vpack.c.b16 %v150, %v149
      %v173 = vpack.c.b16 %v152, %v151
      %v174 = vpack.c.b16 %v154, %v153
      %v175 = vpack.c.b16 %v156, %v155
      %v176 = vpack.c.b16 %v158, %v157
      %v177 = vpack.c.b16 %v160, %v159
      %v178 = vpack.c.b16 %v162, %v161
      %195 = vmatpush.bf16.msra.mxu0 %v170
      %196 = vmatpush.bf16.msra.mxu0 %v169
      %197 = vmatpush.bf16.msra.mxu0 %v168
      %198 = vmatpush.bf16.msra.mxu0 %v167
      %199 = vmatpush.bf16.msra.mxu0 %v166
      %200 = vmatpush.bf16.msra.mxu0 %v165
      %201 = vmatpush.bf16.msra.mxu0 %v164
      %202 = vmatpush.bf16.msra.mxu0 %v163
      %203 = vmatmul.bf16.gmra.mxu0 %v63
      %v204 = vpop.f32.mrf.mxu0
      %v205 = vadd.f32 0.0, %v204
      %v206 = vpop.f32.mrf.mxu0
      %v207 = vadd.f32 0.0, %v206
      %208 = vmatmul.bf16.gmra.mxu0 %v65
      %v209 = vpop.f32.mrf.mxu0
      %v210 = vadd.f32 0.0, %v209
      %v211 = vpop.f32.mrf.mxu0
      %v212 = vadd.f32 0.0, %v211
      %213 = vdwg.mxu0
      %214 = vmatpush.bf16.msra.mxu0 %v178
      %215 = vmatpush.bf16.msra.mxu0 %v177
      %216 = vmatpush.bf16.msra.mxu0 %v176
      %217 = vmatpush.bf16.msra.mxu0 %v175
      %218 = vmatpush.bf16.msra.mxu0 %v174
      %219 = vmatpush.bf16.msra.mxu0 %v173
      %220 = vmatpush.bf16.msra.mxu0 %v172
      %221 = vmatpush.bf16.msra.mxu0 %v171
      %222 = vmatmul.bf16.gmra.mxu0 %v64
      %v223 = vpop.f32.mrf.mxu0
      %v224 = vadd.f32 %v205, %v223
      %v225 = vpop.f32.mrf.mxu0
      %v226 = vadd.f32 %v207, %v225
      %227 = vmatmul.bf16.gmra.mxu0 %v66
      %v228 = vpop.f32.mrf.mxu0
      %v229 = vadd.f32 %v210, %v228
      %v230 = vpop.f32.mrf.mxu0
      %v231 = vadd.f32 %v212, %v230
      %232 = vdwg.mxu0
      %v233 = vpack.c.bf16 %v226, %v224
      %v234 = vpack.c.bf16 %v231, %v229
      %v235 = vld [vmem:[%s2] sm:$0xf]
      %v236 = vld [vmem:[%s2 + $0x4] sm:$0xf]
      %v237 = vld [vmem:[%s2 + $0x8] sm:$0xf]
      %v238 = vld [vmem:[%s2 + $0xc] sm:$0xf]
      %v239 = vld [vmem:[%s2 + $0x10] sm:$0xf]
      %v240 = vld [vmem:[%s2 + $0x14] sm:$0xf]
      %v241 = vld [vmem:[%s2 + $0x18] sm:$0xf]
      %v242 = vld [vmem:[%s2 + $0x1c] sm:$0xf]
      %v243 = vld [vmem:[%s2 + $0x20] sm:$0xf]
      %v244 = vld [vmem:[%s2 + $0x24] sm:$0xf]
      %v245 = vld [vmem:[%s2 + $0x28] sm:$0xf]
      %v246 = vld [vmem:[%s2 + $0x2c] sm:$0xf]
      %v247 = vld [vmem:[%s2 + $0x30] sm:$0xf]
      %v248 = vld [vmem:[%s2 + $0x34] sm:$0xf]
      %v249 = vld [vmem:[%s2 + $0x38] sm:$0xf]
      %v250 = vld [vmem:[%s2 + $0x3c] sm:$0xf]
      %v251 = vld [vmem:[%s3] sm:$0x1]
      %v253 = vperm.slane %v251, 0
      %v271 = vunpack.c.l.b16 %v235
      %v272 = vunpack.c.l.b16 %v236
      %v273 = vunpack.c.l.b16 %v237
      %v274 = vunpack.c.l.b16 %v238
      %v275 = vunpack.c.l.b16 %v239
      %v276 = vunpack.c.l.b16 %v240
      %v277 = vunpack.c.l.b16 %v241
      %v278 = vunpack.c.l.b16 %v242
      %v279 = vunpack.c.l.b16 %v243
      %v280 = vunpack.c.l.b16 %v244
      %v281 = vunpack.c.l.b16 %v245
      %v282 = vunpack.c.l.b16 %v246
      %v283 = vunpack.c.l.b16 %v247
      %v284 = vunpack.c.l.b16 %v248
      %v285 = vunpack.c.l.b16 %v249
      %v286 = vunpack.c.l.b16 %v250
      %v287 = vpack.c.b16 %v272, %v271
      %v288 = vpack.c.b16 %v274, %v273
      %v289 = vpack.c.b16 %v276, %v275
      %v290 = vpack.c.b16 %v278, %v277
      %v291 = vpack.c.b16 %v280, %v279
      %v292 = vpack.c.b16 %v282, %v281
      %v293 = vpack.c.b16 %v284, %v283
      %v294 = vpack.c.b16 %v286, %v285
      %303 = vmatpush.bf16.msra.mxu0 %v294
      %304 = vmatpush.bf16.msra.mxu0 %v293
      %305 = vmatpush.bf16.msra.mxu0 %v292
      %306 = vmatpush.bf16.msra.mxu0 %v291
      %307 = vmatpush.bf16.msra.mxu0 %v290
      %308 = vmatpush.bf16.msra.mxu0 %v289
      %309 = vmatpush.bf16.msra.mxu0 %v288
      %310 = vmatpush.bf16.msra.mxu0 %v287
      %311 = vmatmul.bf16.gmra.mxu0 %v233
      %v312 = vpop.f32.mrf.mxu0
      %v313 = vadd.f32 %v253, %v312
      %v314 = vpop.f32.mrf.mxu0
      %v315 = vadd.f32 %v253, %v314
      %316 = vmatmul.bf16.gmra.mxu0 %v234
      %v317 = vpop.f32.mrf.mxu0
      %v318 = vadd.f32 %v253, %v317
      %v319 = vpop.f32.mrf.mxu0
      %v320 = vadd.f32 %v253, %v319
      %321 = vdwg.mxu0
      %v322 = vmax.f32 %v313, 0.0
      %v323 = vmax.f32 %v315, 0.0
      %v324 = vmax.f32 %v318, 0.0
      %v325 = vmax.f32 %v320, 0.0
      %v326 = vpack.c.bf16 %v322, %v322
      %v327 = vpack.c.bf16 %v323, %v323
      %v328 = vpack.c.bf16 %v324, %v324
      %v329 = vpack.c.bf16 %v325, %v325
      %330 = vst [vmem:[#allocation2] sm:$0xf] %v326
      %331 = vst [vmem:[#allocation2 + $0x4] sm:$0xf] %v327
      %332 = vst [vmem:[#allocation2 + $0x8] sm:$0xf] %v328
      %333 = vst [vmem:[#allocation2 + $0xc] sm:$0xf] %v329
    $region29: #{simple_model_forward.1} parent=1 // pred_fallthru
      _
    %v334 = vld [vmem:[#allocation2] sm:$0xf]
    %v335 = vld [vmem:[#allocation2 + $0x4] sm:$0xf]
    %v336 = vld [vmem:[#allocation2 + $0x8] sm:$0xf]
    %v337 = vld [vmem:[#allocation2 + $0xc] sm:$0xf]
    %v338 = vld [vmem:[%s4] sm:$0xff]
    %v339 = vld [vmem:[%s4 + $0x8] sm:$0xff]
    %v340 = vld [vmem:[%s4 + $0x10] sm:$0xff]
    %v341 = vld [vmem:[%s4 + $0x18] sm:$0xff]
    %v342 = vld [vmem:[%s4 + $0x20] sm:$0xff]
    %v343 = vld [vmem:[%s4 + $0x28] sm:$0xff]
    %v344 = vld [vmem:[%s4 + $0x30] sm:$0xff]
    %v345 = vld [vmem:[%s4 + $0x38] sm:$0xff]
    %v346 = vld [vmem:[%s4 + $0x40] sm:$0xff]
    %v347 = vld [vmem:[%s4 + $0x48] sm:$0xff]
    %v348 = vld [vmem:[%s4 + $0x50] sm:$0xff]
    %v349 = vld [vmem:[%s4 + $0x58] sm:$0xff]
    %v350 = vld [vmem:[%s4 + $0x60] sm:$0xff]
    %v351 = vld [vmem:[%s4 + $0x68] sm:$0xff]
    %v352 = vld [vmem:[%s4 + $0x70] sm:$0xff]
    %v353 = vld [vmem:[%s4 + $0x78] sm:$0xff]
    %v354 = vld [vmem:[%s5] sm:$0x3]
    %v356 = vperm.slane %v354, 0
    %v357 = vperm.slane %v354, 1
    %v364 = vunpack.c.l.b16 %v334
    %v365 = vunpack.c.l.b16 %v335
    %v366 = vunpack.c.l.b16 %v336
    %v367 = vunpack.c.l.b16 %v337
    %v368 = vpack.c.b16 %v365, %v364
    %v369 = vpack.c.b16 %v367, %v366
    %v388 = vunpack.c.l.b16 %v338
    %v389 = vunpack.c.h.b16 %v338
    %v390 = vunpack.c.l.b16 %v339
    %v391 = vunpack.c.h.b16 %v339
    %v392 = vunpack.c.l.b16 %v340
    %v393 = vunpack.c.h.b16 %v340
    %v394 = vunpack.c.l.b16 %v341
    %v395 = vunpack.c.h.b16 %v341
    %v396 = vunpack.c.l.b16 %v342
    %v397 = vunpack.c.h.b16 %v342
    %v398 = vunpack.c.l.b16 %v343
    %v399 = vunpack.c.h.b16 %v343
    %v400 = vunpack.c.l.b16 %v344
    %v401 = vunpack.c.h.b16 %v344
    %v402 = vunpack.c.l.b16 %v345
    %v403 = vunpack.c.h.b16 %v345
    %v404 = vunpack.c.l.b16 %v346
    %v405 = vunpack.c.h.b16 %v346
    %v406 = vunpack.c.l.b16 %v347
    %v407 = vunpack.c.h.b16 %v347
    %v408 = vunpack.c.l.b16 %v348
    %v409 = vunpack.c.h.b16 %v348
    %v410 = vunpack.c.l.b16 %v349
    %v411 = vunpack.c.h.b16 %v349
    %v412 = vunpack.c.l.b16 %v350
    %v413 = vunpack.c.h.b16 %v350
    %v414 = vunpack.c.l.b16 %v351
    %v415 = vunpack.c.h.b16 %v351
    %v416 = vunpack.c.l.b16 %v352
    %v417 = vunpack.c.h.b16 %v352
    %v418 = vunpack.c.l.b16 %v353
    %v419 = vunpack.c.h.b16 %v353
    %v420 = vpack.c.b16 %v390, %v388
    %v421 = vpack.c.b16 %v391, %v389
    %v422 = vpack.c.b16 %v394, %v392
    %v423 = vpack.c.b16 %v395, %v393
    %v424 = vpack.c.b16 %v398, %v396
    %v425 = vpack.c.b16 %v399, %v397
    %v426 = vpack.c.b16 %v402, %v400
    %v427 = vpack.c.b16 %v403, %v401
    %v428 = vpack.c.b16 %v406, %v404
    %v429 = vpack.c.b16 %v407, %v405
    %v430 = vpack.c.b16 %v410, %v408
    %v431 = vpack.c.b16 %v411, %v409
    %v432 = vpack.c.b16 %v414, %v412
    %v433 = vpack.c.b16 %v415, %v413
    %v434 = vpack.c.b16 %v418, %v416
    %v435 = vpack.c.b16 %v419, %v417
    %452 = vmatpush.bf16.msra.mxu0 %v434
    %453 = vmatpush.bf16.msra.mxu0 %v432
    %454 = vmatpush.bf16.msra.mxu0 %v430
    %455 = vmatpush.bf16.msra.mxu0 %v428
    %456 = vmatpush.bf16.msra.mxu0 %v426
    %457 = vmatpush.bf16.msra.mxu0 %v424
    %458 = vmatpush.bf16.msra.mxu0 %v422
    %459 = vmatpush.bf16.msra.mxu0 %v420
    %460 = vmatmul.bf16.gmra.mxu0 %v368
    %v461 = vpop.f32.mrf.mxu0
    %v462 = vadd.f32 %v356, %v461
    %v463 = vpop.f32.mrf.mxu0
    %v464 = vadd.f32 %v356, %v463
    %465 = vmatmul.bf16.gmra.mxu0 %v369
    %v466 = vpop.f32.mrf.mxu0
    %v467 = vadd.f32 %v356, %v466
    %v468 = vpop.f32.mrf.mxu0
    %v469 = vadd.f32 %v356, %v468
    %470 = vdwg.mxu0
    %471 = vmatpush.bf16.msra.mxu0 %v435
    %472 = vmatpush.bf16.msra.mxu0 %v433
    %473 = vmatpush.bf16.msra.mxu0 %v431
    %474 = vmatpush.bf16.msra.mxu0 %v429
    %475 = vmatpush.bf16.msra.mxu0 %v427
    %476 = vmatpush.bf16.msra.mxu0 %v425
    %477 = vmatpush.bf16.msra.mxu0 %v423
    %478 = vmatpush.bf16.msra.mxu0 %v421
    %479 = vmatmul.bf16.gmra.mxu0 %v368
    %v480 = vpop.f32.mrf.mxu0
    %v481 = vadd.f32 %v357, %v480
    %v482 = vpop.f32.mrf.mxu0
    %v483 = vadd.f32 %v357, %v482
    %484 = vmatmul.bf16.gmra.mxu0 %v369
    %v485 = vpop.f32.mrf.mxu0
    %v486 = vadd.f32 %v357, %v485
    %v487 = vpop.f32.mrf.mxu0
    %v488 = vadd.f32 %v357, %v487
    %489 = vdwg.mxu0
    %490 = vst [vmem:[#allocation3] sm:$0xff] %v462
    %491 = vst [vmem:[#allocation3 + $0x8] sm:$0xff] %v481
    %492 = vst [vmem:[#allocation3 + $0x10] sm:$0xff] %v464
    %493 = vst [vmem:[#allocation3 + $0x18] sm:$0xff] %v483
    %494 = vst [vmem:[#allocation3 + $0x20] sm:$0xff] %v467
    %495 = vst [vmem:[#allocation3 + $0x28] sm:$0xff] %v486
    %496 = vst [vmem:[#allocation3 + $0x30] sm:$0xff] %v469
    %497 = vst [vmem:[#allocation3 + $0x38] sm:$0xff] %v488
    // Predicated region
    $region30: #{simple_model_forward.1} parent=1 // pred_check
      _
    $region31: #{simple_model_forward.1} parent=1 // pred_check_branch
      %499 = sbr.rel (0) target = $region33
    $region32: #{simple_model_forward.1} parent=1 // pred_region
      %501 = vsyncadd [#allocation4], 0
      %s502 = sshll.u32 [#allocation3], 4
      %s503 = int_to_ptr.vmem [resolvable:$true] %s502
      %s504 = sshll.u32 %s6, 4
      %s505 = int_to_ptr.hbm [resolvable:$true] %s504
      %510 = dma.vmem_to_hbm [thread:$0]  %s503, 1024, %s505, [#allocation4], 256, 256, 16
    $region33: #{simple_model_forward.1} parent=1 // pred_fallthru
      _
    // Predicated region
    $region34: #{simple_model_forward.1} parent=1 // pred_check
      _
    $region35: #{simple_model_forward.1} parent=1 // pred_check_branch
      %512 = sbr.rel (0) target = $region37
    $region36: #{simple_model_forward.1} parent=1 // pred_region
      %514 = dma.done [#allocation4], 1024
    $region37: #{simple_model_forward.1} parent=1 // pred_fallthru
      _
    %515 = vsyncpa [#allocation4], 1

</llo_original>
